<compile_context>
chip_gen: v6e
topology: v6e:2x2x1
jax: 0.10.0
libtpu: 0.0.40
codegen_flags: <defaults>
</compile_context>

<pallas_src>
import math

import jax
import jax.numpy as jnp
from jax import lax
from jax.experimental import pallas as pl
from jax.experimental.pallas import tpu as pltpu


def _make_conv_gn_silu_kernel(*, cout, cin, lp, w_in, wo, taps, dil,
                              in_kernel_im2col, act_norm, num_groups, eps,
                              n_valid, out_dtype):
    needs_mask = act_norm and (w_in != wo)
    if act_norm:
        cg = cout // num_groups
        inv_count = 1.0 / float(cg * n_valid)

    def kernel(x_ref, w_ref, b_ref, gamma_ref, beta_ref, o_ref, *scratch):
        si = 0
        if in_kernel_im2col:
            # Build the (k*k*Cin, Lp) im2col scratch from unit-stride tap slices
            # ("wide-row" trick: each tap is one contiguous slice of the
            # flattened padded input).  Pays the lane-rotation cost exactly once.
            col_ref = scratch[si]
            si += 1
            for t, (kh, kw) in enumerate(taps):
                base = kh * dil * w_in + kw * dil
                col_ref[pl.ds(t * cin, cin), :] = x_ref[:, pl.ds(base, lp)]
            col = col_ref[...]
        else:
            # Patches were pre-extracted in the wrapper (stride > 1 path).
            col = x_ref[...]

        # Single fused MXU matmul: (Cout, K) x (K, Lp), K = k*k*Cin, f32 acc.
        y = jnp.dot(w_ref[...], col, preferred_element_type=jnp.float32)
        y = y + b_ref[...]

        if not act_norm:
            o_ref[...] = y.astype(out_dtype)
            return

        # Park the conv result in VMEM (bounds vreg live ranges at large Lp).
        y_ref = scratch[si]
        y_ref[...] = y

        yv = y_ref[...]
        if needs_mask:
            # valid pixels: (flat column index) % w_in < wo
            colidx = lax.broadcasted_iota(jnp.int32, (1, lp), 1)
            mask = (colidx % w_in < wo).astype(jnp.float32)
            ym = yv * mask
        else:
            ym = yv

        # Fused single-pass GroupNorm stats: s = sum(y*mask), q = sum(y^2*mask).
        s_row = jnp.sum(ym, axis=1, keepdims=True)          # (Cout, 1)
        q_row = jnp.sum(ym * yv, axis=1, keepdims=True)     # (Cout, 1)

        cidx = lax.broadcasted_iota(jnp.int32, (cout, 1), 0)
        in_g0 = cidx < cg                                    # group-0 channels
        s0 = jnp.sum(jnp.where(in_g0, s_row, 0.0))
        s1 = jnp.sum(jnp.where(in_g0, 0.0, s_row))
        q0 = jnp.sum(jnp.where(in_g0, q_row, 0.0))
        q1 = jnp.sum(jnp.where(in_g0, 0.0, q_row))
        mean = jnp.where(in_g0, s0, s1) * inv_count          # per-channel group mean
        msq = jnp.where(in_g0, q0, q1) * inv_count
        var = jnp.maximum(msq - mean * mean, 0.0)            # biased var (PyTorch GN)

        # Fold gamma / mean into one scale+shift pass.
        scale = lax.rsqrt(var + eps) * gamma_ref[...]
        shift = beta_ref[...] - mean * scale

        yn = y_ref[...] * scale + shift
        # SiLU: sigmoid via EUP reciprocal (keeps the divide off the VALU).
        sig = pl.reciprocal(1.0 + jnp.exp(-yn), approx=True)
        o_ref[...] = (yn * sig).astype(out_dtype)

    return kernel


def basic_conv2d(x_nchw, weight, bias, gn_weight, gn_bias, *, kernel_size=3,
                 stride=1, padding=0, dilation=1, upsampling=False,
                 act_norm=False, num_groups=2, eps=1e-5,
                 out_dtype=jnp.bfloat16):
    """BasicConv2d.forward: Conv2d (+ optional GroupNorm(2)+SiLU).

    NCHW in / NCHW out (out dtype = `out_dtype`, bf16 by default to halve
    HBM writeback)."""
    if upsampling:
        # TODO(synk): upsampling=True path (Conv2d -> nn.PixelShuffle(2)) not implemented.
        raise NotImplementedError("BasicConv2d upsampling path not implemented")

    n, cin, h, w = x_nchw.shape
    cout = weight.shape[0]
    k, s, p, dil = kernel_size, stride, padding, dilation
    if act_norm:
        assert num_groups == 2 and cout % num_groups == 0

    ke = dil * (k - 1) + 1                      # effective kernel extent
    hpad, wpad = h + 2 * p, w + 2 * p
    ho = (hpad - ke) // s + 1
    wo = (wpad - ke) // s + 1
    assert ho > 0 and wo > 0
    kk = k * k
    taps = [(kh, kw) for kh in range(k) for kw in range(k)]

    # PyTorch weight (Cout, Cin, kh, kw) -> (Cout, k*k*Cin), rows matching the
    # im2col ordering (tap-major, then channel); bf16 for the MXU.
    w2 = jnp.transpose(weight, (0, 2, 3, 1)).reshape(cout, kk * cin)
    w2 = w2.astype(jnp.bfloat16)
    b2 = bias.reshape(cout, 1).astype(jnp.float32)
    g2 = gn_weight.reshape(cout, 1).astype(jnp.float32)
    be2 = gn_bias.reshape(cout, 1).astype(jnp.float32)

    in_kernel_im2col = (s == 1)
    scratch_shapes = []

    if in_kernel_im2col:
        # "Wide-row" trick: virtual output width == padded input width, so each
        # tap is a unit-stride slice.  Only widen for 128-lane alignment if the
        # added junk columns stay <= ~12% of the real output width.
        w_in = wpad
        m = 128 // math.gcd(ho, 128)
        extra = (-wpad) % m
        if 0 < extra <= max(1, (wo * 12) // 100):
            w_in = wpad + extra
        lp = ho * w_in

        # Extra zero rows so every tap slice stays in bounds.
        base_max = dil * (k - 1) * w_in + dil * (k - 1)
        needed = base_max + lp
        extra_rows = max(0, -(-(needed - hpad * w_in) // w_in))
        h_in = hpad + extra_rows

        xk = jnp.pad(x_nchw, ((0, 0), (0, 0),
                              (p, p + (h_in - hpad)), (p, p + (w_in - wpad))))
        xk = xk.reshape(n, cin, h_in * w_in).astype(jnp.bfloat16)
        x_spec = pl.BlockSpec((None, cin, h_in * w_in), lambda i: (i, 0, 0))
        scratch_shapes.append(pltpu.VMEM((kk * cin, lp), jnp.bfloat16))  # im2col
    else:
        # stride > 1: strided lane slices would hit the XLU; pre-extract the
        # patches in XLA instead so in-kernel access is unit-stride. No junk cols.
        w_in = wo
        lp = ho * wo
        xpad = jnp.pad(x_nchw, ((0, 0), (0, 0), (p, p), (p, p)))
        pats = []
        for kh, kw in taps:
            sl = lax.slice(xpad,
                           (0, 0, kh * dil, kw * dil),
                           (n, cin, kh * dil + s * (ho - 1) + 1,
                            kw * dil + s * (wo - 1) + 1),
                           (1, 1, s, s))                     # (n, cin, ho, wo)
            pats.append(sl)
        xk = jnp.stack(pats, axis=1).reshape(n, kk * cin, lp)
        xk = xk.astype(jnp.bfloat16)
        x_spec = pl.BlockSpec((None, kk * cin, lp), lambda i: (i, 0, 0))

    if act_norm:
        scratch_shapes.append(pltpu.VMEM((cout, lp), jnp.float32))       # conv result

    kernel = _make_conv_gn_silu_kernel(
        cout=cout, cin=cin, lp=lp, w_in=w_in, wo=wo, taps=taps, dil=dil,
        in_kernel_im2col=in_kernel_im2col, act_norm=act_norm,
        num_groups=num_groups, eps=eps, n_valid=ho * wo, out_dtype=out_dtype)

    out = pl.pallas_call(
        kernel,
        out_shape=jax.ShapeDtypeStruct((n, cout, lp), out_dtype),
        grid_spec=pltpu.PrefetchScalarGridSpec(
            num_scalar_prefetch=0,
            grid=(n,),
            in_specs=[
                x_spec,
                pl.BlockSpec((cout, kk * cin), lambda i: (0, 0)),
                pl.BlockSpec((cout, 1), lambda i: (0, 0)),
                pl.BlockSpec((cout, 1), lambda i: (0, 0)),
                pl.BlockSpec((cout, 1), lambda i: (0, 0)),
            ],
            out_specs=pl.BlockSpec((None, cout, lp), lambda i: (i, 0, 0)),
            scratch_shapes=scratch_shapes,
        ),
        compiler_params=pltpu.CompilerParams(
            dimension_semantics=("parallel",)),
    )(xk, w2, b2, g2, be2)

    out = out.reshape(n, cout, ho, w_in)
    if w_in != wo:
        out = out[:, :, :, :wo]          # drop the few junk columns
    return out


def init_basic_conv2d_params(key, in_channels, out_channels, kernel_size):
    """Mirrors BasicConv2d._init_weights: conv weight trunc_normal(std=0.02),
    conv bias 0; GroupNorm affine defaults (weight=1, bias=0)."""
    w = 0.02 * jax.random.truncated_normal(
        key, -2.0, 2.0, (out_channels, in_channels, kernel_size, kernel_size),
        jnp.float32)
    b = jnp.zeros((out_channels,), jnp.float32)
    gamma = jnp.ones((out_channels,), jnp.float32)
    beta = jnp.zeros((out_channels,), jnp.float32)
    return w, b, gamma, beta


def _reference_forward(x, w, b, gamma, beta, *, stride, padding, dilation,
                       act_norm, num_groups=2, eps=1e-5):
    y = lax.conv_general_dilated(
        x, w, window_strides=(stride, stride),
        padding=[(padding, padding), (padding, padding)],
        rhs_dilation=(dilation, dilation),
        dimension_numbers=("NCHW", "OIHW", "NCHW"),
        precision=lax.Precision.HIGHEST)
    y = y + b.reshape(1, -1, 1, 1)
    if act_norm:
        n, c, hh, ww = y.shape
        yg = y.reshape(n, num_groups, c // num_groups, hh, ww)
        mu = jnp.mean(yg, axis=(2, 3, 4), keepdims=True)
        var = jnp.var(yg, axis=(2, 3, 4), keepdims=True)
        yn = (yg - mu) * lax.rsqrt(var + eps)
        yn = yn.reshape(n, c, hh, ww) * gamma.reshape(1, -1, 1, 1) \
            + beta.reshape(1, -1, 1, 1)
        y = yn * jax.nn.sigmoid(yn)
    return y


if __name__ == "__main__":
    # Small shapes consistent with the module: batch=2, in_channels=4, H=W=16,
    # out_channels=16, kernel=3.
    B, C_IN, H, W = 2, 4, 16, 16
    C_OUT, K = 16, 3

    key = jax.random.PRNGKey(0)
    key, xk_, pk = jax.random.split(key, 3)
    x = jax.random.normal(xk_, (B, C_IN, H, W), jnp.float32)
    w, b, gamma, beta = init_basic_conv2d_params(pk, C_IN, C_OUT, K)

    # 1) stride=1, padding=1, act_norm=True (fused Conv + GroupNorm(2) + SiLU).
    out = basic_conv2d(x, w, b, gamma, beta, kernel_size=K, stride=1,
                       padding=1, act_norm=True)
    out = jax.block_until_ready(out)
    assert out.shape == (B, C_OUT, H, W), out.shape
    ref = _reference_forward(x, w, b, gamma, beta, stride=1, padding=1,
                             dilation=1, act_norm=True)
    err = float(jnp.max(jnp.abs(out.astype(jnp.float32) - ref)))
    assert err < 0.25, f"act_norm path: max abs error vs reference = {err}"

    # 2) stride=2, padding=1, act_norm=False (plain conv; pre-extracted patches).
    out2 = basic_conv2d(x, w, b, gamma, beta, kernel_size=K, stride=2,
                        padding=1, act_norm=False)
    out2 = jax.block_until_ready(out2)
    ref2 = _reference_forward(x, w, b, gamma, beta, stride=2, padding=1,
                              dilation=1, act_norm=False)
    assert out2.shape == ref2.shape, (out2.shape, ref2.shape)
    err2 = float(jnp.max(jnp.abs(out2.astype(jnp.float32) - ref2)))
    assert err2 < 0.1, f"conv-only path: max abs error vs reference = {err2}"

    print("KERNEL_OK")
</pallas_src>

<mosaic_0001>
module attributes {stable_mosaic.version = 11 : i64} {
  func.func @kernel(%arg0: i32, %arg1: memref<1x4x342xbf16, #tpu.memory_space<vmem>>, %arg2: memref<16x36xbf16, #tpu.memory_space<vmem>>, %arg3: memref<16x1xf32, #tpu.memory_space<vmem>>, %arg4: memref<16x1xf32, #tpu.memory_space<vmem>>, %arg5: memref<16x1xf32, #tpu.memory_space<vmem>>, %arg6: memref<1x16x288xbf16, #tpu.memory_space<vmem>>, %arg7: memref<36x288xbf16, #tpu.memory_space<vmem>>, %arg8: memref<16x288xf32, #tpu.memory_space<vmem>>) attributes {dimension_semantics = [#tpu.dimension_semantics<parallel>], iteration_bounds = array<i64: 2>, scalar_prefetch = 0 : i64, scratch_operands = 2 : i64, tpu.core_type = #tpu.core_type<tc>, window_params = [{transform_indices = @transform_0, window_bounds = array<i64: 1, 4, 342>}, {pipeline_mode = #tpu.pipeline_mode<synchronous>, transform_indices = @transform_1, window_bounds = array<i64: 16, 36>}, {pipeline_mode = #tpu.pipeline_mode<synchronous>, transform_indices = @transform_2, window_bounds = array<i64: 16, 1>}, {pipeline_mode = #tpu.pipeline_mode<synchronous>, transform_indices = @transform_3, window_bounds = array<i64: 16, 1>}, {pipeline_mode = #tpu.pipeline_mode<synchronous>, transform_indices = @transform_4, window_bounds = array<i64: 16, 1>}, {transform_indices = @transform_5, window_bounds = array<i64: 1, 16, 288>}]} {
    %c0 = arith.constant 0 : index
    %c0_0 = arith.constant 0 : index
    %c0_1 = arith.constant 0 : index
    %0 = vector.load %arg1[%c0, %c0_0, %c0_1] : memref<1x4x342xbf16, #tpu.memory_space<vmem>>, vector<1x4x288xbf16>
    %1 = vector.shape_cast %0 : vector<1x4x288xbf16> to vector<4x288xbf16>
    %c0_2 = arith.constant 0 : index
    %c0_3 = arith.constant 0 : index
    %2 = vector.load %arg7[%c0_2, %c0_3] : memref<36x288xbf16, #tpu.memory_space<vmem>>, vector<4x288xbf16>
    tpu.vector_store %arg7[%c0_2, %c0_3], %1 {strides = array<i32>} : memref<36x288xbf16, #tpu.memory_space<vmem>>, vector<4x288xbf16>,
    %c0_4 = arith.constant 0 : index
    %c0_5 = arith.constant 0 : index
    %c1 = arith.constant 1 : index
    %3 = vector.load %arg1[%c0_4, %c0_5, %c1] : memref<1x4x342xbf16, #tpu.memory_space<vmem>>, vector<1x4x288xbf16>
    %4 = vector.shape_cast %3 : vector<1x4x288xbf16> to vector<4x288xbf16>
    %c4 = arith.constant 4 : index
    %c0_6 = arith.constant 0 : index
    %5 = vector.load %arg7[%c4, %c0_6] : memref<36x288xbf16, #tpu.memory_space<vmem>>, vector<4x288xbf16>
    tpu.vector_store %arg7[%c4, %c0_6], %4 {strides = array<i32>} : memref<36x288xbf16, #tpu.memory_space<vmem>>, vector<4x288xbf16>,
    %c0_7 = arith.constant 0 : index
    %c0_8 = arith.constant 0 : index
    %c2 = arith.constant 2 : index
    %6 = vector.load %arg1[%c0_7, %c0_8, %c2] : memref<1x4x342xbf16, #tpu.memory_space<vmem>>, vector<1x4x288xbf16>
    %7 = vector.shape_cast %6 : vector<1x4x288xbf16> to vector<4x288xbf16>
    %c8 = arith.constant 8 : index
    %c0_9 = arith.constant 0 : index
    %8 = vector.load %arg7[%c8, %c0_9] : memref<36x288xbf16, #tpu.memory_space<vmem>>, vector<4x288xbf16>
    tpu.vector_store %arg7[%c8, %c0_9], %7 {strides = array<i32>} : memref<36x288xbf16, #tpu.memory_space<vmem>>, vector<4x288xbf16>,
    %c0_10 = arith.constant 0 : index
    %c0_11 = arith.constant 0 : index
    %c18 = arith.constant 18 : index
    %9 = vector.load %arg1[%c0_10, %c0_11, %c18] : memref<1x4x342xbf16, #tpu.memory_space<vmem>>, vector<1x4x288xbf16>
    %10 = vector.shape_cast %9 : vector<1x4x288xbf16> to vector<4x288xbf16>
    %c12 = arith.constant 12 : index
    %c0_12 = arith.constant 0 : index
    %11 = vector.load %arg7[%c12, %c0_12] : memref<36x288xbf16, #tpu.memory_space<vmem>>, vector<4x288xbf16>
    tpu.vector_store %arg7[%c12, %c0_12], %10 {strides = array<i32>} : memref<36x288xbf16, #tpu.memory_space<vmem>>, vector<4x288xbf16>,
    %c0_13 = arith.constant 0 : index
    %c0_14 = arith.constant 0 : index
    %c19 = arith.constant 19 : index
    %12 = vector.load %arg1[%c0_13, %c0_14, %c19] : memref<1x4x342xbf16, #tpu.memory_space<vmem>>, vector<1x4x288xbf16>
    %13 = vector.shape_cast %12 : vector<1x4x288xbf16> to vector<4x288xbf16>
    %c16 = arith.constant 16 : index
    %c0_15 = arith.constant 0 : index
    %14 = vector.load %arg7[%c16, %c0_15] : memref<36x288xbf16, #tpu.memory_space<vmem>>, vector<4x288xbf16>
    tpu.vector_store %arg7[%c16, %c0_15], %13 {strides = array<i32>} : memref<36x288xbf16, #tpu.memory_space<vmem>>, vector<4x288xbf16>,
    %c0_16 = arith.constant 0 : index
    %c0_17 = arith.constant 0 : index
    %c20 = arith.constant 20 : index
    %15 = vector.load %arg1[%c0_16, %c0_17, %c20] : memref<1x4x342xbf16, #tpu.memory_space<vmem>>, vector<1x4x288xbf16>
    %16 = vector.shape_cast %15 : vector<1x4x288xbf16> to vector<4x288xbf16>
    %c20_18 = arith.constant 20 : index
    %c0_19 = arith.constant 0 : index
    %17 = vector.load %arg7[%c20_18, %c0_19] : memref<36x288xbf16, #tpu.memory_space<vmem>>, vector<4x288xbf16>
    tpu.vector_store %arg7[%c20_18, %c0_19], %16 {strides = array<i32>} : memref<36x288xbf16, #tpu.memory_space<vmem>>, vector<4x288xbf16>,
    %c0_20 = arith.constant 0 : index
    %c0_21 = arith.constant 0 : index
    %c36 = arith.constant 36 : index
    %18 = vector.load %arg1[%c0_20, %c0_21, %c36] : memref<1x4x342xbf16, #tpu.memory_space<vmem>>, vector<1x4x288xbf16>
    %19 = vector.shape_cast %18 : vector<1x4x288xbf16> to vector<4x288xbf16>
    %c24 = arith.constant 24 : index
    %c0_22 = arith.constant 0 : index
    %20 = vector.load %arg7[%c24, %c0_22] : memref<36x288xbf16, #tpu.memory_space<vmem>>, vector<4x288xbf16>
    tpu.vector_store %arg7[%c24, %c0_22], %19 {strides = array<i32>} : memref<36x288xbf16, #tpu.memory_space<vmem>>, vector<4x288xbf16>,
    %c0_23 = arith.constant 0 : index
    %c0_24 = arith.constant 0 : index
    %c37 = arith.constant 37 : index
    %21 = vector.load %arg1[%c0_23, %c0_24, %c37] : memref<1x4x342xbf16, #tpu.memory_space<vmem>>, vector<1x4x288xbf16>
    %22 = vector.shape_cast %21 : vector<1x4x288xbf16> to vector<4x288xbf16>
    %c28 = arith.constant 28 : index
    %c0_25 = arith.constant 0 : index
    %23 = vector.load %arg7[%c28, %c0_25] : memref<36x288xbf16, #tpu.memory_space<vmem>>, vector<4x288xbf16>
    tpu.vector_store %arg7[%c28, %c0_25], %22 {strides = array<i32>} : memref<36x288xbf16, #tpu.memory_space<vmem>>, vector<4x288xbf16>,
    %c0_26 = arith.constant 0 : index
    %c0_27 = arith.constant 0 : index
    %c38 = arith.constant 38 : index
    %24 = vector.load %arg1[%c0_26, %c0_27, %c38] : memref<1x4x342xbf16, #tpu.memory_space<vmem>>, vector<1x4x288xbf16>
    %25 = vector.shape_cast %24 : vector<1x4x288xbf16> to vector<4x288xbf16>
    %c32 = arith.constant 32 : index
    %c0_28 = arith.constant 0 : index
    %26 = vector.load %arg7[%c32, %c0_28] : memref<36x288xbf16, #tpu.memory_space<vmem>>, vector<4x288xbf16>
    tpu.vector_store %arg7[%c32, %c0_28], %25 {strides = array<i32>} : memref<36x288xbf16, #tpu.memory_space<vmem>>, vector<4x288xbf16>,
    %c0_29 = arith.constant 0 : index
    %c0_30 = arith.constant 0 : index
    %27 = vector.load %arg7[%c0_29, %c0_30] : memref<36x288xbf16, #tpu.memory_space<vmem>>, vector<36x288xbf16>
    %c0_31 = arith.constant 0 : index
    %c0_32 = arith.constant 0 : index
    %28 = vector.load %arg2[%c0_31, %c0_32] : memref<16x36xbf16, #tpu.memory_space<vmem>>, vector<16x36xbf16>
    %cst = arith.constant dense<0.000000e+00> : vector<16x288xf32>
    %29 = tpu.matmul %28, %27, %cst {dimension_numbers = #tpu.dot_dimension_numbers<[1], [0], [0], [1], [0, 0, 1, 1], [], []>} : vector<16x36xbf16>, vector<36x288xbf16>, vector<16x288xf32> -> vector<16x288xf32>
    %c0_33 = arith.constant 0 : index
    %c0_34 = arith.constant 0 : index
    %30 = vector.load %arg3[%c0_33, %c0_34] : memref<16x1xf32, #tpu.memory_space<vmem>>, vector<16x1xf32>
    %31 = vector.broadcast %30 : vector<16x1xf32> to vector<16x288xf32>
    %32 = arith.addf %29, %31 : vector<16x288xf32>
    %c0_35 = arith.constant 0 : index
    %c0_36 = arith.constant 0 : index
    %33 = vector.load %arg8[%c0_35, %c0_36] : memref<16x288xf32, #tpu.memory_space<vmem>>, vector<16x288xf32>
    tpu.vector_store %arg8[%c0_35, %c0_36], %32 {strides = array<i32>} : memref<16x288xf32, #tpu.memory_space<vmem>>, vector<16x288xf32>,
    %c0_37 = arith.constant 0 : index
    %c0_38 = arith.constant 0 : index
    %34 = vector.load %arg8[%c0_37, %c0_38] : memref<16x288xf32, #tpu.memory_space<vmem>>, vector<16x288xf32>
    %35 = tpu.iota {dimensions = array<i32: 1>} : vector<1x288xi32>
    %c18_i32 = arith.constant 18 : i32
    %c0_i32 = arith.constant 0 : i32
    %36 = arith.cmpi eq, %c18_i32, %c0_i32 : i32
    %c1_i32 = arith.constant 1 : i32
    %37 = arith.select %36, %c1_i32, %c18_i32 : i32
    %38 = vector.broadcast %37 : i32 to vector<1x288xi32>
    %39 = arith.remsi %35, %38 : vector<1x288xi32>
    %c0_i32_39 = arith.constant 0 : i32
    %40 = vector.broadcast %c0_i32_39 : i32 to vector<1x288xi32>
    %41 = arith.cmpi ne, %39, %40 : vector<1x288xi32>
    %c0_i32_40 = arith.constant 0 : i32
    %42 = vector.broadcast %c0_i32_40 : i32 to vector<1x288xi32>
    %43 = arith.cmpi slt, %39, %42 : vector<1x288xi32>
    %c0_i32_41 = arith.constant 0 : i32
    %44 = arith.cmpi slt, %37, %c0_i32_41 : i32
    %45 = vector.broadcast %44 : i1 to vector<1x288xi1>
    %46 = vector.broadcast %45 : vector<1x288xi1> to vector<1x288xi1>
    %47 = arith.xori %43, %46 : vector<1x288xi1>
    %48 = arith.andi %47, %41 : vector<1x288xi1>
    %49 = vector.broadcast %37 : i32 to vector<1x288xi32>
    %50 = arith.addi %39, %49 : vector<1x288xi32>
    %51 = arith.select %48, %50, %39 : vector<1x288xi1>, vector<1x288xi32>
    %c16_i32 = arith.constant 16 : i32
    %52 = vector.broadcast %c16_i32 : i32 to vector<1x288xi32>
    %53 = arith.cmpi slt, %51, %52 : vector<1x288xi32>
    %54 = arith.extui %53 : vector<1x288xi1> to vector<1x288xi32>
    %55 = arith.sitofp %54 : vector<1x288xi32> to vector<1x288xf32>
    %56 = vector.broadcast %55 : vector<1x288xf32> to vector<16x288xf32>
    %57 = arith.mulf %34, %56 : vector<16x288xf32>
    %cst_42 = arith.constant dense<0.000000e+00> : vector<16xf32>
    %58 = vector.multi_reduction <add>, %57, %cst_42 [1] : vector<16x288xf32> to vector<16xf32>
    %59 = vector.shape_cast %58 : vector<16xf32> to vector<16x1xf32>
    %60 = arith.mulf %57, %34 : vector<16x288xf32>
    %cst_43 = arith.constant dense<0.000000e+00> : vector<16xf32>
    %61 = vector.multi_reduction <add>, %60, %cst_43 [1] : vector<16x288xf32> to vector<16xf32>
    %62 = vector.shape_cast %61 : vector<16xf32> to vector<16x1xf32>
    %63 = tpu.iota {dimensions = array<i32: 0>} : vector<16x1xi32>
    %c8_i32 = arith.constant 8 : i32
    %64 = vector.broadcast %c8_i32 : i32 to vector<16x1xi32>
    %65 = arith.cmpi slt, %63, %64 : vector<16x1xi32>
    %cst_44 = arith.constant 0.000000e+00 : f32
    %66 = vector.broadcast %cst_44 : f32 to vector<16x1xf32>
    %67 = arith.select %65, %59, %66 : vector<16x1xi1>, vector<16x1xf32>
    %68 = vector.shape_cast %67 : vector<16x1xf32> to vector<1x16x1xf32>
    %cst_45 = arith.constant dense<0.000000e+00> : vector<1xf32>
    %69 = vector.multi_reduction <add>, %68, %cst_45 [1, 2] : vector<1x16x1xf32> to vector<1xf32>
    %70 = vector.shape_cast %69 : vector<1xf32> to vector<1x1x1xf32>
    %71 = vector.extract %70[0, 0, 0] : f32 from vector<1x1x1xf32>
    %cst_46 = arith.constant 0.000000e+00 : f32
    %72 = vector.broadcast %cst_46 : f32 to vector<16x1xf32>
    %73 = arith.select %65, %72, %59 : vector<16x1xi1>, vector<16x1xf32>
    %74 = vector.shape_cast %73 : vector<16x1xf32> to vector<1x16x1xf32>
    %cst_47 = arith.constant dense<0.000000e+00> : vector<1xf32>
    %75 = vector.multi_reduction <add>, %74, %cst_47 [1, 2] : vector<1x16x1xf32> to vector<1xf32>
    %76 = vector.shape_cast %75 : vector<1xf32> to vector<1x1x1xf32>
    %77 = vector.extract %76[0, 0, 0] : f32 from vector<1x1x1xf32>
    %cst_48 = arith.constant 0.000000e+00 : f32
    %78 = vector.broadcast %cst_48 : f32 to vector<16x1xf32>
    %79 = arith.select %65, %62, %78 : vector<16x1xi1>, vector<16x1xf32>
    %80 = vector.shape_cast %79 : vector<16x1xf32> to vector<1x16x1xf32>
    %cst_49 = arith.constant dense<0.000000e+00> : vector<1xf32>
    %81 = vector.multi_reduction <add>, %80, %cst_49 [1, 2] : vector<1x16x1xf32> to vector<1xf32>
    %82 = vector.shape_cast %81 : vector<1xf32> to vector<1x1x1xf32>
    %83 = vector.extract %82[0, 0, 0] : f32 from vector<1x1x1xf32>
    %cst_50 = arith.constant 0.000000e+00 : f32
    %84 = vector.broadcast %cst_50 : f32 to vector<16x1xf32>
    %85 = arith.select %65, %84, %62 : vector<16x1xi1>, vector<16x1xf32>
    %86 = vector.shape_cast %85 : vector<16x1xf32> to vector<1x16x1xf32>
    %cst_51 = arith.constant dense<0.000000e+00> : vector<1xf32>
    %87 = vector.multi_reduction <add>, %86, %cst_51 [1, 2] : vector<1x16x1xf32> to vector<1xf32>
    %88 = vector.shape_cast %87 : vector<1xf32> to vector<1x1x1xf32>
    %89 = vector.extract %88[0, 0, 0] : f32 from vector<1x1x1xf32>
    %90 = vector.broadcast %71 : f32 to vector<16x1xf32>
    %91 = vector.broadcast %77 : f32 to vector<16x1xf32>
    %92 = arith.select %65, %90, %91 : vector<16x1xi1>, vector<16x1xf32>
    %cst_52 = arith.constant 4.8828125E-4 : f32
    %93 = vector.broadcast %cst_52 : f32 to vector<16x1xf32>
    %94 = arith.mulf %92, %93 : vector<16x1xf32>
    %95 = vector.broadcast %83 : f32 to vector<16x1xf32>
    %96 = vector.broadcast %89 : f32 to vector<16x1xf32>
    %97 = arith.select %65, %95, %96 : vector<16x1xi1>, vector<16x1xf32>
    %cst_53 = arith.constant 4.8828125E-4 : f32
    %98 = vector.broadcast %cst_53 : f32 to vector<16x1xf32>
    %99 = arith.mulf %97, %98 : vector<16x1xf32>
    %100 = arith.mulf %94, %94 : vector<16x1xf32>
    %101 = arith.subf %99, %100 : vector<16x1xf32>
    %cst_54 = arith.constant 0.000000e+00 : f32
    %102 = vector.broadcast %cst_54 : f32 to vector<16x1xf32>
    %103 = arith.maximumf %101, %102 : vector<16x1xf32>
    %cst_55 = arith.constant 9.99999974E-6 : f32
    %104 = vector.broadcast %cst_55 : f32 to vector<16x1xf32>
    %105 = arith.addf %103, %104 : vector<16x1xf32>
    %106 = math.rsqrt %105 : vector<16x1xf32>
    %c0_56 = arith.constant 0 : index
    %c0_57 = arith.constant 0 : index
    %107 = vector.load %arg4[%c0_56, %c0_57] : memref<16x1xf32, #tpu.memory_space<vmem>>, vector<16x1xf32>
    %108 = arith.mulf %106, %107 : vector<16x1xf32>
    %c0_58 = arith.constant 0 : index
    %c0_59 = arith.constant 0 : index
    %109 = vector.load %arg5[%c0_58, %c0_59] : memref<16x1xf32, #tpu.memory_space<vmem>>, vector<16x1xf32>
    %110 = arith.mulf %94, %108 : vector<16x1xf32>
    %111 = arith.subf %109, %110 : vector<16x1xf32>
    %c0_60 = arith.constant 0 : index
    %c0_61 = arith.constant 0 : index
    %112 = vector.load %arg8[%c0_60, %c0_61] : memref<16x288xf32, #tpu.memory_space<vmem>>, vector<16x288xf32>
    %113 = vector.broadcast %108 : vector<16x1xf32> to vector<16x288xf32>
    %114 = arith.mulf %112, %113 : vector<16x288xf32>
    %115 = vector.broadcast %111 : vector<16x1xf32> to vector<16x288xf32>
    %116 = arith.addf %114, %115 : vector<16x288xf32>
    %cst_62 = arith.constant 0.000000e+00 : f32
    %117 = vector.broadcast %cst_62 : f32 to vector<16x288xf32>
    %118 = arith.subf %117, %116 : vector<16x288xf32>
    %119 = math.exp %118 : vector<16x288xf32>
    %cst_63 = arith.constant 1.000000e+00 : f32
    %120 = vector.broadcast %cst_63 : f32 to vector<16x288xf32>
    %121 = arith.addf %120, %119 : vector<16x288xf32>
    %122 = tpu.reciprocal %121 {approx = true} : vector<16x288xf32> -> vector<16x288xf32>
    %123 = arith.mulf %116, %122 : vector<16x288xf32>
    %124 = arith.truncf %123 : vector<16x288xf32> to vector<16x288xbf16>
    %c0_64 = arith.constant 0 : index
    %c0_65 = arith.constant 0 : index
    %c0_66 = arith.constant 0 : index
    %125 = vector.load %arg6[%c0_64, %c0_65, %c0_66] : memref<1x16x288xbf16, #tpu.memory_space<vmem>>, vector<1x16x288xbf16>
    %126 = vector.shape_cast %125 : vector<1x16x288xbf16> to vector<16x288xbf16>
    %127 = vector.shape_cast %124 : vector<16x288xbf16> to vector<1x16x288xbf16>
    tpu.vector_store %arg6[%c0_64, %c0_65, %c0_66], %127 {strides = array<i32>} : memref<1x16x288xbf16, #tpu.memory_space<vmem>>, vector<1x16x288xbf16>,
    return
  }
  func.func @transform_0(%arg0: i32) -> (i32, i32, i32) {
    %c0_i32 = arith.constant 0 : i32
    %c0_i32_0 = arith.constant 0 : i32
    %c0_i32_1 = arith.constant 0 : i32
    return %arg0, %c0_i32, %c0_i32_0 : i32, i32, i32
  }
  func.func @transform_1(%arg0: i32) -> (i32, i32) {
    %c0_i32 = arith.constant 0 : i32
    %c0_i32_0 = arith.constant 0 : i32
    %c0_i32_1 = arith.constant 0 : i32
    return %c0_i32, %c0_i32_0 : i32, i32
  }
  func.func @transform_2(%arg0: i32) -> (i32, i32) {
    %c0_i32 = arith.constant 0 : i32
    %c0_i32_0 = arith.constant 0 : i32
    %c0_i32_1 = arith.constant 0 : i32
    return %c0_i32, %c0_i32_0 : i32, i32
  }
  func.func @transform_3(%arg0: i32) -> (i32, i32) {
    %c0_i32 = arith.constant 0 : i32
    %c0_i32_0 = arith.constant 0 : i32
    %c0_i32_1 = arith.constant 0 : i32
    return %c0_i32, %c0_i32_0 : i32, i32
  }
  func.func @transform_4(%arg0: i32) -> (i32, i32) {
    %c0_i32 = arith.constant 0 : i32
    %c0_i32_0 = arith.constant 0 : i32
    %c0_i32_1 = arith.constant 0 : i32
    return %c0_i32, %c0_i32_0 : i32, i32
  }
  func.func @transform_5(%arg0: i32) -> (i32, i32, i32) {
    %c0_i32 = arith.constant 0 : i32
    %c0_i32_0 = arith.constant 0 : i32
    %c0_i32_1 = arith.constant 0 : i32
    return %arg0, %c0_i32, %c0_i32_0 : i32, i32, i32
  }
}

</mosaic_0001>

<llo_original>
// kernel: tpu_custom_call.1
$region0: #{tpu_custom_call.1}
  #allocation0 [shape = 'u32[]', space=smem, size = 0x4, offset = 0x4, fixed_abs, tag = 'smem constant byte address 0x4 - core index']
  #allocation1 [shape = 'u32[144,128]{1,0:T(1,128)}', space=vmem, size = 0x12000, scoped, tag = 'internal scratch']
  #allocation2 [shape = 'bf16[36,288]{1,0:T(8,128)(2,1)}', space=vmem, size = 0x7800, scoped, tag = 'scratch operand']
  #allocation3 [shape = 'f32[16,288]{1,0:T(8,128)}', space=vmem, size = 0x6000, scoped, tag = 'scratch operand']
  %s0 = inlined_call_operand.vmem [shape: bf16[2,4,342], index: 0, kind: input, shape index: {}]
  %s1 = inlined_call_operand.vmem [shape: bf16[16,36], index: 1, kind: input, shape index: {}]
  %s2 = inlined_call_operand.vmem [shape: f32[16,1], index: 2, kind: input, shape index: {}]
  %s3 = inlined_call_operand.vmem [shape: f32[16,1], index: 3, kind: input, shape index: {}]
  %s4 = inlined_call_operand.vmem [shape: f32[16,1], index: 4, kind: input, shape index: {}]
  %s5 = inlined_call_operand.hbm [shape: bf16[2,16,288], index: 5, kind: output, shape index: {}]
  %s6 = sld [smem:[#allocation0]]
  $region53: #{tpu_custom_call.1} parent=0
    _
  %s8 = ssub.s32 1, %s6
  %s9 = scalar_select 0, %s8, %s6
  $region1: #{tpu_custom_call.1} parent=0
    #allocation4 [shape = 'u8[24576]{0}', space=vmem, size = 0x6000, scoped, tag = 'output window, operand 0']
    #allocation5 [shape = 's32[2]{0}', space=sflag, size = 0x8, scoped, tag = 'scoped memory for tpu_custom_call.1']
    %10 = vsyncpa [#allocation5], 0
    %s11 = scalar_lea.sflag [#allocation5], 1
    %12 = vsyncpa %s11, 0
    loop: start=0, step=1, limit=4
    $region2: #{tpu_custom_call.1} parent=1 // loop_pre_header
      _
    $region3: #{tpu_custom_call.1} parent=1 // loop_header
      %s14 = sphi 0, %s18
      %p15 = scmp.ge.s32.totalorder %s14, 4
      %s24 = sphi 0, %s26
      %s27 = sphi 0, %s24
      %s28 = sphi 0, %s27
      %s44 = sphi 0, %s28
      %s48 = sphi 0, %s48
      %s50 = sphi 0, %s48
      %s51 = sphi 0, %s50
      %s65 = sphi 0, %s51
      %s69 = sphi 0, %s69
      %s71 = sphi 0, %s69
      %s72 = sphi 0, %s71
      %s86 = sphi 0, %s72
      %s90 = sphi 0, %s90
      %s92 = sphi 0, %s90
      %s93 = sphi 0, %s92
      %s107 = sphi 0, %s93
      %s111 = sphi 0, %s111
      %s113 = sphi 0, %s111
      %s114 = sphi 0, %s113
      %s128 = sphi 0, %s114
      %s134 = sphi 0, %s136
      %s137 = sphi 0, %s134
      %s138 = sphi 0, %s137
      %s154 = sphi 0, %s138
    $region4: #{tpu_custom_call.1} parent=1 // loop_header_branch
      %17 = sbr.rel (%p15) target = $region8
    $region5: #{tpu_custom_call.1} parent=1 // loop_body
      %s19 = ssub.s32 %s14, 1
      %s20 = ssub.s32 %s14, 2
      %s21 = sadd.s32 %s14, 1
      %s22 = ssub.s32 %s14, %s21
      %p23 = scmp.eq.s32.totalorder %s22, 0
      %s25 = sadd.s32 %s24, 1
      %s26 = scalar_select %p23, %s24, %s25
      %p29 = pneg %p23
      %p30 = scmp.eq.s32.totalorder %s14, 1
      %p31 = por %p29, %p30
      %p32 = scmp.ne.s32.totalorder %s24, %s27
      %p33 = scmp.eq.s32.totalorder %s14, 0
      %p34 = por %p32, %p33
      %p35 = scmp.ne.s32.totalorder %s24, %s27
      %p36 = scmp.eq.s32.totalorder %s19, 1
      %p37 = por %p35, %p36
      %p38 = scmp.ne.s32.totalorder %s27, %s28
      %p39 = scmp.eq.s32.totalorder %s19, 0
      %p40 = por %p38, %p39
      %p41 = scmp.ne.s32.totalorder %s27, %s28
      %p42 = scmp.eq.s32.totalorder %s20, 1
      %p43 = por %p41, %p42
      %p45 = scmp.ne.s32.totalorder %s28, %s44
      %p46 = scmp.eq.s32.totalorder %s20, 0
      %p47 = por %p45, %p46
      %s49 = sadd.s32 %s48, 1
      %p52 = scmp.eq.s32.totalorder %s14, 1
      %p53 = scmp.ne.s32.totalorder %s48, %s50
      %p54 = scmp.eq.s32.totalorder %s14, 0
      %p55 = por %p53, %p54
      %p56 = scmp.ne.s32.totalorder %s48, %s50
      %p57 = scmp.eq.s32.totalorder %s19, 1
      %p58 = por %p56, %p57
      %p59 = scmp.ne.s32.totalorder %s50, %s51
      %p60 = scmp.eq.s32.totalorder %s19, 0
      %p61 = por %p59, %p60
      %p62 = scmp.ne.s32.totalorder %s50, %s51
      %p63 = scmp.eq.s32.totalorder %s20, 1
      %p64 = por %p62, %p63
      %p66 = scmp.ne.s32.totalorder %s51, %s65
      %p67 = scmp.eq.s32.totalorder %s20, 0
      %p68 = por %p66, %p67
      %s70 = sadd.s32 %s69, 1
      %p73 = scmp.eq.s32.totalorder %s14, 1
      %p74 = scmp.ne.s32.totalorder %s69, %s71
      %p75 = scmp.eq.s32.totalorder %s14, 0
      %p76 = por %p74, %p75
      %p77 = scmp.ne.s32.totalorder %s69, %s71
      %p78 = scmp.eq.s32.totalorder %s19, 1
      %p79 = por %p77, %p78
      %p80 = scmp.ne.s32.totalorder %s71, %s72
      %p81 = scmp.eq.s32.totalorder %s19, 0
      %p82 = por %p80, %p81
      %p83 = scmp.ne.s32.totalorder %s71, %s72
      %p84 = scmp.eq.s32.totalorder %s20, 1
      %p85 = por %p83, %p84
      %p87 = scmp.ne.s32.totalorder %s72, %s86
      %p88 = scmp.eq.s32.totalorder %s20, 0
      %p89 = por %p87, %p88
      %s91 = sadd.s32 %s90, 1
      %p94 = scmp.eq.s32.totalorder %s14, 1
      %p95 = scmp.ne.s32.totalorder %s90, %s92
      %p96 = scmp.eq.s32.totalorder %s14, 0
      %p97 = por %p95, %p96
      %p98 = scmp.ne.s32.totalorder %s90, %s92
      %p99 = scmp.eq.s32.totalorder %s19, 1
      %p100 = por %p98, %p99
      %p101 = scmp.ne.s32.totalorder %s92, %s93
      %p102 = scmp.eq.s32.totalorder %s19, 0
      %p103 = por %p101, %p102
      %p104 = scmp.ne.s32.totalorder %s92, %s93
      %p105 = scmp.eq.s32.totalorder %s20, 1
      %p106 = por %p104, %p105
      %p108 = scmp.ne.s32.totalorder %s93, %s107
      %p109 = scmp.eq.s32.totalorder %s20, 0
      %p110 = por %p108, %p109
      %s112 = sadd.s32 %s111, 1
      %p115 = scmp.eq.s32.totalorder %s14, 1
      %p116 = scmp.ne.s32.totalorder %s111, %s113
      %p117 = scmp.eq.s32.totalorder %s14, 0
      %p118 = por %p116, %p117
      %p119 = scmp.ne.s32.totalorder %s111, %s113
      %p120 = scmp.eq.s32.totalorder %s19, 1
      %p121 = por %p119, %p120
      %p122 = scmp.ne.s32.totalorder %s113, %s114
      %p123 = scmp.eq.s32.totalorder %s19, 0
      %p124 = por %p122, %p123
      %p125 = scmp.ne.s32.totalorder %s113, %s114
      %p126 = scmp.eq.s32.totalorder %s20, 1
      %p127 = por %p125, %p126
      %p129 = scmp.ne.s32.totalorder %s114, %s128
      %p130 = scmp.eq.s32.totalorder %s20, 0
      %p131 = por %p129, %p130
      %s132 = ssub.s32 %s14, %s21
      %p133 = scmp.eq.s32.totalorder %s132, 0
      %s135 = sadd.s32 %s134, 1
      %s136 = scalar_select %p133, %s134, %s135
      %p139 = pneg %p133
      %p140 = scmp.eq.s32.totalorder %s14, 1
      %p141 = por %p139, %p140
      %p142 = scmp.ne.s32.totalorder %s134, %s137
      %p143 = scmp.eq.s32.totalorder %s14, 0
      %p144 = por %p142, %p143
      %p145 = scmp.ne.s32.totalorder %s134, %s137
      %p146 = scmp.eq.s32.totalorder %s19, 1
      %p147 = por %p145, %p146
      %p148 = scmp.ne.s32.totalorder %s137, %s138
      %p149 = scmp.eq.s32.totalorder %s19, 0
      %p150 = por %p148, %p149
      %p151 = scmp.ne.s32.totalorder %s137, %s138
      %p152 = scmp.eq.s32.totalorder %s20, 1
      %p153 = por %p151, %p152
      %p155 = scmp.ne.s32.totalorder %s138, %s154
      %p156 = scmp.eq.s32.totalorder %s20, 0
      %p157 = por %p155, %p156
      %p158 = scmp.le.s32.totalorder 1, %s14
      %p159 = scmp.lt.s32.totalorder %s14, 3
      %p160 = pnand %p158, %p159
      %p161 = pneg %p160
      // Predicated region
      $region9: #{tpu_custom_call.1} parent=5 // pred_check
        _
      $region10: #{tpu_custom_call.1} parent=5 // pred_check_branch
        %163 = sbr.rel (%p160) target = $region12
      $region11: #{tpu_custom_call.1} parent=5 // pred_region
        %s164 = ssub.s32 %s14, 1
        // Predicated region
        $region13: #{tpu_custom_call.1} parent=11 // pred_check
          %p165 = pneg %p61
        $region14: #{tpu_custom_call.1} parent=11 // pred_check_branch
          %167 = sbr.rel (%p165) target = $region16
        $region15: #{tpu_custom_call.1} parent=11 // pred_region
          _
        $region16: #{tpu_custom_call.1} parent=11 // pred_fallthru
          _
        // Predicated region
        $region17: #{tpu_custom_call.1} parent=11 // pred_check
          %p168 = pneg %p82
        $region18: #{tpu_custom_call.1} parent=11 // pred_check_branch
          %170 = sbr.rel (%p168) target = $region20
        $region19: #{tpu_custom_call.1} parent=11 // pred_region
          _
        $region20: #{tpu_custom_call.1} parent=11 // pred_fallthru
          _
        // Predicated region
        $region21: #{tpu_custom_call.1} parent=11 // pred_check
          %p171 = pneg %p103
        $region22: #{tpu_custom_call.1} parent=11 // pred_check_branch
          %173 = sbr.rel (%p171) target = $region24
        $region23: #{tpu_custom_call.1} parent=11 // pred_region
          _
        $region24: #{tpu_custom_call.1} parent=11 // pred_fallthru
          _
        // Predicated region
        $region25: #{tpu_custom_call.1} parent=11 // pred_check
          %p174 = pneg %p124
        $region26: #{tpu_custom_call.1} parent=11 // pred_check_branch
          %176 = sbr.rel (%p174) target = $region28
        $region27: #{tpu_custom_call.1} parent=11 // pred_region
          _
        $region28: #{tpu_custom_call.1} parent=11 // pred_fallthru
          _
      $region12: #{tpu_custom_call.1} parent=5 // pred_fallthru
        _
      %p177 = scmp.lt.s32.totalorder %s14, 2
      // Predicated region
      $region29: #{tpu_custom_call.1} parent=5 // pred_check
        %p178 = pneg %p177
      $region30: #{tpu_custom_call.1} parent=5 // pred_check_branch
        %180 = sbr.rel (%p178) target = $region32
      $region31: #{tpu_custom_call.1} parent=5 // pred_region
        // Predicated region
        $region33: #{tpu_custom_call.1} parent=31 // pred_check
          %p181 = pneg %p34
        $region34: #{tpu_custom_call.1} parent=31 // pred_check_branch
          %183 = sbr.rel (%p181) target = $region36
        $region35: #{tpu_custom_call.1} parent=31 // pred_region
          %p184 = scmp.lt.s32.totalorder %s14, 1
          %s185 = scalar_select %p184, %s14, 1
          %s186 = smul.addr %s185, 3
          %s187 = smul.addr %s186, 2
          %s188 = scalar_lea.vmem %s0, %s187
        $region36: #{tpu_custom_call.1} parent=31 // pred_fallthru
          _
      $region32: #{tpu_custom_call.1} parent=5 // pred_fallthru
        _
      %p189 = scmp.le.s32.totalorder 1, %s14
      %p190 = scmp.lt.s32.totalorder %s14, 3
      %p191 = pnand %p189, %p190
      %p192 = pneg %p191
      // Predicated region
      $region37: #{tpu_custom_call.1} parent=5 // pred_check
        _
      $region38: #{tpu_custom_call.1} parent=5 // pred_check_branch
        %194 = sbr.rel (%p191) target = $region40
      $region39: #{tpu_custom_call.1} parent=5 // pred_region
        %s195 = ssub.s32 %s14, 1
        %p196 = scmp.lt.s32.totalorder %s19, 1
        %s197 = scalar_select %p196, %s19, 1
        %s198 = smul.addr %s197, 3
        %s199 = smul.addr %s198, 2
        %s200 = scalar_lea.vmem %s0, %s199
        %p201 = pneg %p40
        %p202 = pneg %p37
        %p203 = pneg %p61
        %p204 = pneg %p58
        %p205 = pneg %p82
        %p206 = pneg %p79
        %p207 = pneg %p103
        %p208 = pneg %p100
        %p209 = pneg %p124
        %p210 = pneg %p121
        %p211 = pneg %p150
        %p212 = pneg %p147
        %s213 = sand.u32 %s137, 1
        %s214 = scalar_lea.sflag [#allocation5], %s213
        %s215 = sand.u32 %s137, 1
        %s216 = smul.addr %s215, 24
        %s217 = scalar_lea.vmem [#allocation4], %s216
        %p218 = scmp.lt.s32.totalorder %s19, 1
        %s219 = scalar_select %p218, %s19, 1
        %s220 = smul.addr %s219, 3
        %s221 = smul.addr %s220, 2
        %s222 = scalar_lea.vmem %s0, %s221
        %v224 = vld [vmem:[%s222] sm:$0x3f]
        %v226 = vcombine.high %v224, %v224
        %v228 = vunpack.c.l.s4 1983009808
        %v229 = vunpack.c.0.s8 %v228
        %v230 = vlaneseq
        %v231 = vshrl.u32 %v230, 7
        %v232 = vsub.s32 %v229, %v231
        %v233 = vrot.slane %v224, %v232
        %v235 = vunpack.c.l.s4 1983009808
        %v236 = vunpack.c.0.s8 %v235
        %v237 = vlaneseq
        %v238 = vshrl.u32 %v237, 7
        %v239 = vsub.s32 %v236, %v238
        %v240 = vrot.slane %v226, %v239
        %243 = vst [vmem:[#allocation2] sm:$0x33] %v233
        %vm244 = vcmask 254976
        %245 = vst.msk [vmem:[#allocation2 + $0x8] sm:$0x3] %vm244, %v240
        %v246 = vld [vmem:[%s222] sm:$0x3f]
        %v248 = vcombine.low %v246, %v246
        %v250 = vunpack.c.l.s4 1983009808
        %v251 = vunpack.c.0.s8 %v250
        %v252 = vlaneseq
        %v253 = vshrl.u32 %v252, 7
        %v254 = vsub.s32 %v251, %v253
        %v255 = vrot.slane %v248, %v254
        %v257 = vunpack.c.l.s4 1983009808
        %v258 = vunpack.c.0.s8 %v257
        %v259 = vlaneseq
        %v260 = vshrl.u32 %v259, 7
        %v261 = vsub.s32 %v258, %v260
        %v262 = vrot.slane %v246, %v261
        %263 = vrot.lane.b32.xlu0 %v255, 127
        %v264 = vpop.permute.xlu0 %263
        %265 = vrot.lane.b32.xlu0 %v262, 127
        %v266 = vpop.permute.xlu0 %265
        %v267 = vrot.slane %v264, 4
        %v268 = vrot.slane %v266, 4
        %vm269 = vcmask 1043456
        %v270 = vsel %vm269, %v267, %v268
        %vm271 = vcmask 1039360
        %v272 = vsel %vm271, %v264, %v270
        %275 = vst [vmem:[#allocation2] sm:$0xcc] %v272
        %vm276 = vcmask 257026
        %277 = vst.msk [vmem:[#allocation2 + $0x8] sm:$0xc] %vm276, %v266
        %v278 = vld [vmem:[%s222] sm:$0x3f]
        %v280 = vcombine.high %v278, %v278
        %v282 = vunpack.c.l.s4 1983009808
        %v283 = vunpack.c.0.s8 %v282
        %v284 = vlaneseq
        %v285 = vshrl.u32 %v284, 7
        %v286 = vsub.s32 %v283, %v285
        %v287 = vrot.slane %v278, %v286
        %v289 = vunpack.c.l.s4 1983009808
        %v290 = vunpack.c.0.s8 %v289
        %v291 = vlaneseq
        %v292 = vshrl.u32 %v291, 7
        %v293 = vsub.s32 %v290, %v292
        %v294 = vrot.slane %v280, %v293
        %295 = vrot.lane.b32.xlu0 %v287, 126
        %v296 = vpop.permute.xlu0 %295
        %297 = vrot.lane.b32.xlu0 %v294, 126
        %v298 = vpop.permute.xlu0 %297
        %v299 = vrot.slane %v296, 4
        %v300 = vrot.slane %v298, 4
        %v301 = vsel %vm269, %v299, %v300
        %vm302 = vcmask 1031168
        %v303 = vsel %vm302, %v296, %v301
        %306 = vst [vmem:[#allocation2 + $0xc] sm:$0x33] %v303
        %307 = vst.msk [vmem:[#allocation2 + $0x14] sm:$0x3] %vm244, %v298
        %v308 = vld [vmem:[%s222] sm:$0x3f]
        %v310 = vcombine.low %v308, %v308
        %v312 = vunpack.c.l.s4 1983009808
        %v313 = vunpack.c.0.s8 %v312
        %v314 = vlaneseq
        %v315 = vshrl.u32 %v314, 7
        %v316 = vsub.s32 %v313, %v315
        %v317 = vrot.slane %v310, %v316
        %v319 = vunpack.c.l.s4 1983009808
        %v320 = vunpack.c.0.s8 %v319
        %v321 = vlaneseq
        %v322 = vshrl.u32 %v321, 7
        %v323 = vsub.s32 %v320, %v322
        %v324 = vrot.slane %v308, %v323
        %325 = vrot.lane.b32.xlu0 %v317, 110
        %v326 = vpop.permute.xlu0 %325
        %327 = vrot.lane.b32.xlu0 %v324, 110
        %v328 = vpop.permute.xlu0 %327
        %v329 = vrot.slane %v326, 4
        %v330 = vrot.slane %v328, 4
        %v331 = vsel %vm269, %v329, %v330
        %vm332 = vcmask 900096
        %v333 = vsel %vm332, %v326, %v331
        %336 = vst [vmem:[#allocation2 + $0xc] sm:$0xcc] %v333
        %337 = vst.msk [vmem:[#allocation2 + $0x14] sm:$0xc] %vm276, %v328
        %v338 = vld [vmem:[%s222] sm:$0x3f]
        %v340 = vcombine.high %v338, %v338
        %v342 = vunpack.c.l.s4 1983009808
        %v343 = vunpack.c.0.s8 %v342
        %v344 = vlaneseq
        %v345 = vshrl.u32 %v344, 7
        %v346 = vsub.s32 %v343, %v345
        %v347 = vrot.slane %v338, %v346
        %v349 = vunpack.c.l.s4 1983009808
        %v350 = vunpack.c.0.s8 %v349
        %v351 = vlaneseq
        %v352 = vshrl.u32 %v351, 7
        %v353 = vsub.s32 %v350, %v352
        %v354 = vrot.slane %v340, %v353
        %355 = vrot.lane.b32.xlu0 %v347, 109
        %v356 = vpop.permute.xlu0 %355
        %357 = vrot.lane.b32.xlu0 %v354, 109
        %v358 = vpop.permute.xlu0 %357
        %v359 = vrot.slane %v356, 4
        %v360 = vrot.slane %v358, 4
        %v361 = vsel %vm269, %v359, %v360
        %vm362 = vcmask 891904
        %v363 = vsel %vm362, %v356, %v361
        %366 = vst [vmem:[#allocation2 + $0x18] sm:$0x33] %v363
        %367 = vst.msk [vmem:[#allocation2 + $0x20] sm:$0x3] %vm244, %v358
        %v368 = vld [vmem:[%s222] sm:$0x3f]
        %v370 = vcombine.low %v368, %v368
        %v372 = vunpack.c.l.s4 1983009808
        %v373 = vunpack.c.0.s8 %v372
        %v374 = vlaneseq
        %v375 = vshrl.u32 %v374, 7
        %v376 = vsub.s32 %v373, %v375
        %v377 = vrot.slane %v370, %v376
        %v379 = vunpack.c.l.s4 1983009808
        %v380 = vunpack.c.0.s8 %v379
        %v381 = vlaneseq
        %v382 = vshrl.u32 %v381, 7
        %v383 = vsub.s32 %v380, %v382
        %v384 = vrot.slane %v368, %v383
        %385 = vrot.lane.b32.xlu0 %v377, 108
        %v386 = vpop.permute.xlu0 %385
        %387 = vrot.lane.b32.xlu0 %v384, 108
        %v388 = vpop.permute.xlu0 %387
        %v389 = vrot.slane %v386, 4
        %v390 = vrot.slane %v388, 4
        %v391 = vsel %vm269, %v389, %v390
        %vm392 = vcmask 883712
        %v393 = vsel %vm392, %v386, %v391
        %396 = vst [vmem:[#allocation2 + $0x18] sm:$0xcc] %v393
        %397 = vst.msk [vmem:[#allocation2 + $0x20] sm:$0xc] %vm276, %v388
        %v398 = vld [vmem:[%s222] sm:$0x3f]
        %v400 = vcombine.high %v398, %v398
        %v402 = vunpack.c.l.s4 1983009808
        %v403 = vunpack.c.0.s8 %v402
        %v404 = vlaneseq
        %v405 = vshrl.u32 %v404, 7
        %v406 = vsub.s32 %v403, %v405
        %v407 = vrot.slane %v398, %v406
        %v409 = vunpack.c.l.s4 1983009808
        %v410 = vunpack.c.0.s8 %v409
        %v411 = vlaneseq
        %v412 = vshrl.u32 %v411, 7
        %v413 = vsub.s32 %v410, %v412
        %v414 = vrot.slane %v400, %v413
        %415 = vrot.lane.b32.xlu0 %v407, 92
        %v416 = vpop.permute.xlu0 %415
        %417 = vrot.lane.b32.xlu0 %v414, 92
        %v418 = vpop.permute.xlu0 %417
        %v419 = vrot.slane %v416, 4
        %v420 = vrot.slane %v418, 4
        %v421 = vsel %vm269, %v419, %v420
        %vm422 = vcmask 752640
        %v423 = vsel %vm422, %v416, %v421
        %426 = vst [vmem:[#allocation2 + $0x24] sm:$0x33] %v423
        %427 = vst.msk [vmem:[#allocation2 + $0x2c] sm:$0x3] %vm244, %v418
        %v428 = vld [vmem:[%s222] sm:$0x3f]
        %v430 = vcombine.low %v428, %v428
        %v432 = vunpack.c.l.s4 1983009808
        %v433 = vunpack.c.0.s8 %v432
        %v434 = vlaneseq
        %v435 = vshrl.u32 %v434, 7
        %v436 = vsub.s32 %v433, %v435
        %v437 = vrot.slane %v430, %v436
        %v439 = vunpack.c.l.s4 1983009808
        %v440 = vunpack.c.0.s8 %v439
        %v441 = vlaneseq
        %v442 = vshrl.u32 %v441, 7
        %v443 = vsub.s32 %v440, %v442
        %v444 = vrot.slane %v428, %v443
        %445 = vrot.lane.b32.xlu0 %v437, 91
        %v446 = vpop.permute.xlu0 %445
        %447 = vrot.lane.b32.xlu0 %v444, 91
        %v448 = vpop.permute.xlu0 %447
        %v449 = vrot.slane %v446, 4
        %v450 = vrot.slane %v448, 4
        %v451 = vsel %vm269, %v449, %v450
        %vm452 = vcmask 744448
        %v453 = vsel %vm452, %v446, %v451
        %456 = vst [vmem:[#allocation2 + $0x24] sm:$0xcc] %v453
        %457 = vst.msk [vmem:[#allocation2 + $0x2c] sm:$0xc] %vm276, %v448
        %v458 = vld [vmem:[%s222] sm:$0x3f]
        %v460 = vcombine.high %v458, %v458
        %v462 = vunpack.c.l.s4 1983009808
        %v463 = vunpack.c.0.s8 %v462
        %v464 = vlaneseq
        %v465 = vshrl.u32 %v464, 7
        %v466 = vsub.s32 %v463, %v465
        %v467 = vrot.slane %v458, %v466
        %v469 = vunpack.c.l.s4 1983009808
        %v470 = vunpack.c.0.s8 %v469
        %v471 = vlaneseq
        %v472 = vshrl.u32 %v471, 7
        %v473 = vsub.s32 %v470, %v472
        %v474 = vrot.slane %v460, %v473
        %475 = vrot.lane.b32.xlu0 %v467, 90
        %v476 = vpop.permute.xlu0 %475
        %477 = vrot.lane.b32.xlu0 %v474, 90
        %v478 = vpop.permute.xlu0 %477
        %v479 = vrot.slane %v476, 4
        %v480 = vrot.slane %v478, 4
        %v481 = vsel %vm269, %v479, %v480
        %vm482 = vcmask 736256
        %v483 = vsel %vm482, %v476, %v481
        %486 = vst [vmem:[#allocation2 + $0x30] sm:$0x33] %v483
        %487 = vst.msk [vmem:[#allocation2 + $0x38] sm:$0x3] %vm244, %v478
        %v488 = vld [vmem:[#allocation2] sm:$0xff]
        %v489 = vld [vmem:[#allocation2 + $0x8] sm:$0xf]
        %v490 = vld [vmem:[#allocation2 + $0xc] sm:$0xff]
        %v491 = vld [vmem:[#allocation2 + $0x14] sm:$0xf]
        %v492 = vld [vmem:[#allocation2 + $0x18] sm:$0xff]
        %v493 = vld [vmem:[#allocation2 + $0x20] sm:$0xf]
        %v494 = vld [vmem:[#allocation2 + $0x24] sm:$0xff]
        %v495 = vld [vmem:[#allocation2 + $0x2c] sm:$0xf]
        %v496 = vld [vmem:[#allocation2 + $0x30] sm:$0x33]
        %v497 = vld [vmem:[#allocation2 + $0x38] sm:$0x3]
        %v498 = vld [vmem:[%s1] sm:$0xf]
        %v499 = vld [vmem:[%s1 + $0x4] sm:$0xf]
        %v500 = vld [vmem:[%s2] sm:$0xff]
        %v501 = vld [vmem:[%s2 + $0x8] sm:$0xff]
        %503 = vset.pattern.permute.xlu0 0
        %504 = vperm.xlu0 %503, %v500
        %v505 = vpop.permute.xlu0 %504
        %508 = vset.pattern.permute.xlu0 0
        %509 = vperm.xlu0 %508, %v501
        %v510 = vpop.permute.xlu0 %509
        %v514 = vunpack.c.l.b16 %v498
        %v515 = vunpack.c.l.b16 %v499
        %v516 = vpack.c.b16 %v515, %v514
        %v527 = vunpack.c.l.b16 %v488
        %v528 = vunpack.c.h.b16 %v488
        %v529 = vunpack.c.l.b16 %v489
        %v530 = vunpack.c.l.b16 %v490
        %v531 = vunpack.c.h.b16 %v490
        %v532 = vunpack.c.l.b16 %v491
        %v533 = vunpack.c.l.b16 %v492
        %v534 = vunpack.c.h.b16 %v492
        %v535 = vunpack.c.l.b16 %v493
        %v536 = vunpack.c.l.b16 %v494
        %v537 = vunpack.c.h.b16 %v494
        %v538 = vunpack.c.l.b16 %v495
        %v539 = vunpack.c.l.b16 %v496
        %v540 = vunpack.c.h.b16 %v496
        %v541 = vunpack.c.l.b16 %v497
        %v542 = vpack.c.b16 %v530, %v527
        %v543 = vpack.c.b16 %v531, %v528
        %v544 = vpack.c.b16 %v532, %v529
        %v545 = vpack.c.b16 %v536, %v533
        %v546 = vpack.c.b16 %v537, %v534
        %v547 = vpack.c.b16 %v538, %v535
        %v548 = vpack.c.b16 %v539, %v539
        %v549 = vpack.c.b16 %v540, %v540
        %v550 = vpack.c.b16 %v541, %v541
        %vm557 = vcmask 293888
        %v559 = vsel %vm557, %v516, 0
        %vm561 = vcmask 1041408
        %v563 = vsel %vm561, %v548, 0
        %v566 = vsel %vm561, %v549, 0
        %v569 = vsel %vm561, %v550, 0
        %571 = vmatprep.subr.bf16.mxu0 0
        %572 = vmatpush1.bf16.msra.mxu0 0
        %573 = vmatprep.subr.bf16.mxu0 0
        %574 = vmatpush1.bf16.msra.mxu0 0
        %575 = vmatprep.subr.bf16.mxu0 0
        %576 = vmatpush1.bf16.msra.mxu0 0
        %577 = vmatprep.subr.bf16.mxu0 0
        %578 = vmatpush1.bf16.msra.mxu0 0
        %579 = vmatprep.subr.bf16.mxu0 0
        %580 = vmatpush1.bf16.msra.mxu0 0
        %581 = vmatprep.subr.bf16.mxu0 %v566
        %582 = vmatpush1.bf16.msra.mxu0 %v563
        %583 = vmatprep.subr.bf16.mxu0 %v546
        %584 = vmatpush1.bf16.msra.mxu0 %v545
        %585 = vmatprep.subr.bf16.mxu0 %v543
        %586 = vmatpush1.bf16.msra.mxu0 %v542
        %587 = vmatprep.subr.bf16.mxu0 0
        %588 = vmatpush2.bf16.msra.mxu0 0
        %589 = vmatprep.subr.bf16.mxu0 0
        %590 = vmatpush2.bf16.msra.mxu0 0
        %591 = vmatprep.subr.bf16.mxu0 0
        %592 = vmatpush2.bf16.msra.mxu0 0
        %593 = vmatprep.subr.bf16.mxu0 0
        %594 = vmatpush2.bf16.msra.mxu0 0
        %595 = vmatprep.subr.bf16.mxu0 0
        %596 = vmatpush2.bf16.msra.mxu0 0
        %597 = vmatprep.subr.bf16.mxu0 0
        %598 = vmatpush2.bf16.msra.mxu0 0
        %599 = vmatprep.subr.bf16.mxu0 0
        %600 = vmatpush2.bf16.msra.mxu0 0
        %601 = vmatprep.subr.bf16.mxu0 0
        %602 = vmatpush2.bf16.msra.mxu0 0
        %603 = vmatprep.mubr.bf16.mxu0 0
        %604 = vmatmul.mubr.bf16.gmra.mxu0 %v559
        %v605 = vpop.f32.mrf.mxu0
        %v606 = vadd.f32 %v505, %v605
        %v607 = vpop.f32.mrf.mxu0
        %v608 = vadd.f32 %v505, %v607
        %v609 = vpop.f32.mrf.mxu0
        %v610 = vadd.f32 %v510, %v609
        %v611 = vpop.f32.mrf.mxu0
        %v612 = vadd.f32 %v510, %v611
        %613 = vdwg.mxu0
        %614 = vmatprep.subr.bf16.mxu0 0
        %615 = vmatpush1.bf16.msra.mxu0 0
        %616 = vmatprep.subr.bf16.mxu0 0
        %617 = vmatpush1.bf16.msra.mxu0 0
        %618 = vmatprep.subr.bf16.mxu0 0
        %619 = vmatpush1.bf16.msra.mxu0 0
        %620 = vmatprep.subr.bf16.mxu0 0
        %621 = vmatpush1.bf16.msra.mxu0 0
        %622 = vmatprep.subr.bf16.mxu0 0
        %623 = vmatpush1.bf16.msra.mxu0 0
        %624 = vmatprep.subr.bf16.mxu0 0
        %625 = vmatpush1.bf16.msra.mxu0 %v569
        %626 = vmatprep.subr.bf16.mxu0 0
        %627 = vmatpush1.bf16.msra.mxu0 %v547
        %628 = vmatprep.subr.bf16.mxu0 0
        %629 = vmatpush1.bf16.msra.mxu0 %v544
        %630 = vmatprep.subr.bf16.mxu0 0
        %631 = vmatpush2.bf16.msra.mxu0 0
        %632 = vmatprep.subr.bf16.mxu0 0
        %633 = vmatpush2.bf16.msra.mxu0 0
        %634 = vmatprep.subr.bf16.mxu0 0
        %635 = vmatpush2.bf16.msra.mxu0 0
        %636 = vmatprep.subr.bf16.mxu0 0
        %637 = vmatpush2.bf16.msra.mxu0 0
        %638 = vmatprep.subr.bf16.mxu0 0
        %639 = vmatpush2.bf16.msra.mxu0 0
        %640 = vmatprep.subr.bf16.mxu0 0
        %641 = vmatpush2.bf16.msra.mxu0 0
        %642 = vmatprep.subr.bf16.mxu0 0
        %643 = vmatpush2.bf16.msra.mxu0 0
        %644 = vmatprep.subr.bf16.mxu0 0
        %645 = vmatpush2.bf16.msra.mxu0 0
        %646 = vmatprep.mubr.bf16.mxu0 0
        %647 = vmatmul.mubr.bf16.gmra.mxu0 %v559
        %v648 = vpop.f32.mrf.mxu0
        %v649 = vadd.f32 %v505, %v648
        %v650 = vpop.f32.mrf.mxu0
        %v651 = vpop.f32.mrf.mxu0
        %v652 = vadd.f32 %v510, %v651
        %v653 = vpop.f32.mrf.mxu0
        %654 = vdwg.mxu0
        %655 = vst [vmem:[#allocation3] sm:$0xff] %v606
        %656 = vst [vmem:[#allocation3 + $0x8] sm:$0xff] %v608
        %vm657 = vcmask 261120
        %658 = vst.msk [vmem:[#allocation3 + $0x10] sm:$0xff] %vm657, %v649
        %659 = vst [vmem:[#allocation3 + $0x18] sm:$0xff] %v610
        %660 = vst [vmem:[#allocation3 + $0x20] sm:$0xff] %v612
        %661 = vst.msk [vmem:[#allocation3 + $0x28] sm:$0xff] %vm657, %v652
        %v662 = vld [vmem:[#allocation3] sm:$0xff]
        %v663 = vld [vmem:[#allocation3 + $0x8] sm:$0xff]
        %v664 = vld [vmem:[#allocation3 + $0x10] sm:$0xff]
        %v665 = vld [vmem:[#allocation3 + $0x18] sm:$0xff]
        %v666 = vld [vmem:[#allocation3 + $0x20] sm:$0xff]
        %v667 = vld [vmem:[#allocation3 + $0x28] sm:$0xff]
        %v668 = vlaneseq
        %v669 = vand.u32 %v668, 127
        %v670 = vadd.s32 %v669, 128
        %v671 = vadd.s32 %v669, 256
        %vm672 = vcmp.lt.s32.totalorder %v669, 0
        %v673 = vsub.s32 0, %v669
        %v674 = vsel %vm672, %v673, %v669
        %v675 = vmul.u32.u64.compose %v674, 3817748708
        %v676 = vextract.low.u32 %v675
        %v677 = vextract.high.u32 %v675
        %v678 = vshrl.u32 %v677, 4
        %v679 = vmul.u32 %v678, 18
        %v680 = vsub.s32 %v674, %v679
        %v681 = vsub.s32 0, %v680
        %v682 = vsel %vm672, %v681, %v680
        %vm683 = vcmp.lt.s32.totalorder %v670, 0
        %v684 = vsub.s32 0, %v670
        %v685 = vsel %vm683, %v684, %v670
        %v686 = vmul.u32.u64.compose %v685, 3817748708
        %v687 = vextract.low.u32 %v686
        %v688 = vextract.high.u32 %v686
        %v689 = vshrl.u32 %v688, 4
        %v690 = vmul.u32 %v689, 18
        %v691 = vsub.s32 %v685, %v690
        %v692 = vsub.s32 0, %v691
        %v693 = vsel %vm683, %v692, %v691
        %vm694 = vcmp.lt.s32.totalorder %v671, 0
        %v695 = vsub.s32 0, %v671
        %v696 = vsel %vm694, %v695, %v671
        %v697 = vmul.u32.u64.compose %v696, 3817748708
        %v698 = vextract.low.u32 %v697
        %v699 = vextract.high.u32 %v697
        %v700 = vshrl.u32 %v699, 4
        %v701 = vmul.u32 %v700, 18
        %v702 = vsub.s32 %v696, %v701
        %v703 = vsub.s32 0, %v702
        %v704 = vsel %vm694, %v703, %v702
        %vm705 = vcmp.ne.s32.totalorder %v682, 0
        %vm706 = vcmp.ne.s32.totalorder %v693, 0
        %vm707 = vcmp.ne.s32.totalorder %v704, 0
        %vm708 = vcmp.lt.s32.totalorder %v682, 0
        %vm709 = vcmp.lt.s32.totalorder %v693, 0
        %vm710 = vcmp.lt.s32.totalorder %v704, 0
        %vm711 = vmand %vm708, %vm705
        %vm712 = vmand %vm709, %vm706
        %vm713 = vmand %vm710, %vm707
        %v714 = vadd.s32 %v682, 18
        %v715 = vadd.s32 %v693, 18
        %v716 = vadd.s32 %v704, 18
        %v717 = vsel %vm711, %v714, %v682
        %v718 = vsel %vm712, %v715, %v693
        %v719 = vsel %vm713, %v716, %v704
        %vm720 = vcmp.lt.s32.totalorder %v717, 16
        %vm721 = vcmp.lt.s32.totalorder %v718, 16
        %vm722 = vcmp.lt.s32.totalorder %v719, 16
        %v723 = vsel %vm720, 1, 0
        %v724 = vsel %vm721, 1, 0
        %v725 = vsel %vm722, 1, 0
        %v726 = vcvt.s32.f32 %v723
        %v727 = vcvt.s32.f32 %v724
        %v728 = vcvt.s32.f32 %v725
        %v729 = vmul.f32 %v662, %v726
        %v730 = vmul.f32 %v663, %v727
        %v731 = vmul.f32 %v664, %v728
        %v732 = vmul.f32 %v665, %v726
        %v733 = vmul.f32 %v666, %v727
        %v734 = vmul.f32 %v667, %v728
        %v735 = vadd.f32 %v729, %v730
        %v736 = vsel %vm657, %v731, 0.0
        %v737 = vadd.f32 %v735, %v736
        %738 = vadd.xlane.f32.xlu0 %v737
        %v739 = vpop.xlane.xlu0 %738
        %v740 = vadd.f32 %v732, %v733
        %v741 = vsel %vm657, %v734, 0.0
        %v742 = vadd.f32 %v740, %v741
        %743 = vadd.xlane.f32.xlu0 %v742
        %v744 = vpop.xlane.xlu0 %743
        %v745 = vmul.f32 %v729, %v662
        %v746 = vmul.f32 %v730, %v663
        %v747 = vmul.f32 %v731, %v664
        %v748 = vmul.f32 %v732, %v665
        %v749 = vmul.f32 %v733, %v666
        %v750 = vmul.f32 %v734, %v667
        %v751 = vadd.f32 %v745, %v746
        %v752 = vsel %vm657, %v747, 0.0
        %v753 = vadd.f32 %v751, %v752
        %754 = vadd.xlane.f32.xlu0 %v753
        %v755 = vpop.xlane.xlu0 %754
        %v756 = vadd.f32 %v748, %v749
        %v757 = vsel %vm657, %v750, 0.0
        %v758 = vadd.f32 %v756, %v757
        %759 = vadd.xlane.f32.xlu0 %v758
        %v760 = vpop.xlane.xlu0 %759
        %v761 = vlaneseq
        %v762 = vshrl.u32 %v761, 7
        %v763 = vadd.s32 %v762, 8
        %vm764 = vcmp.lt.s32.totalorder %v762, 8
        %vm765 = vcmp.lt.s32.totalorder %v763, 8
        %v766 = vsel %vm764, %v739, 0.0
        %v767 = vsel %vm765, %v744, 0.0
        %vm768 = vcmask 7168
        %v769 = vsel %vm768, %v766, 0.0
        %v770 = vsel %vm768, %v767, 0.0
        %v771 = vadd.f32 %v769, %v770
        %772 = vadd.xlane.f32.xlu0 %v771
        %v773 = vpop.xlane.xlu0 %772
        %v774 = vrot.slane %v773, 4
        %v775 = vadd.f32 %v773, %v774
        %v776 = vrot.slane %v775, 2
        %v777 = vadd.f32 %v775, %v776
        %v778 = vrot.slane %v777, 1
        %v779 = vadd.f32 %v777, %v778
        %s780 = vtos %v779
        %v781 = vsel %vm764, 0.0, %v739
        %v782 = vsel %vm765, 0.0, %v744
        %v783 = vsel %vm768, %v781, 0.0
        %v784 = vsel %vm768, %v782, 0.0
        %v785 = vadd.f32 %v783, %v784
        %786 = vadd.xlane.f32.xlu0 %v785
        %v787 = vpop.xlane.xlu0 %786
        %v788 = vrot.slane %v787, 4
        %v789 = vadd.f32 %v787, %v788
        %v790 = vrot.slane %v789, 2
        %v791 = vadd.f32 %v789, %v790
        %v792 = vrot.slane %v791, 1
        %v793 = vadd.f32 %v791, %v792
        %s794 = vtos %v793
        %v795 = vsel %vm764, %v755, 0.0
        %v796 = vsel %vm765, %v760, 0.0
        %v797 = vsel %vm768, %v795, 0.0
        %v798 = vsel %vm768, %v796, 0.0
        %v799 = vadd.f32 %v797, %v798
        %800 = vadd.xlane.f32.xlu0 %v799
        %v801 = vpop.xlane.xlu0 %800
        %v802 = vrot.slane %v801, 4
        %v803 = vadd.f32 %v801, %v802
        %v804 = vrot.slane %v803, 2
        %v805 = vadd.f32 %v803, %v804
        %v806 = vrot.slane %v805, 1
        %v807 = vadd.f32 %v805, %v806
        %s808 = vtos %v807
        %v809 = vsel %vm764, 0.0, %v755
        %v810 = vsel %vm765, 0.0, %v760
        %v811 = vsel %vm768, %v809, 0.0
        %v812 = vsel %vm768, %v810, 0.0
        %v813 = vadd.f32 %v811, %v812
        %814 = vadd.xlane.f32.xlu0 %v813
        %v815 = vpop.xlane.xlu0 %814
        %v816 = vrot.slane %v815, 4
        %v817 = vadd.f32 %v815, %v816
        %v818 = vrot.slane %v817, 2
        %v819 = vadd.f32 %v817, %v818
        %v820 = vrot.slane %v819, 1
        %v821 = vadd.f32 %v819, %v820
        %s822 = vtos %v821
        %v823 = vstv %s780
        %v824 = vstv %s794
        %v825 = vsel %vm764, %v823, %v824
        %v826 = vsel %vm765, %v823, %v824
        %v827 = vmul.f32 %v825, 0.00048828125
        %v828 = vmul.f32 %v826, 0.00048828125
        %v829 = vstv %s808
        %v830 = vstv %s822
        %v831 = vsel %vm764, %v829, %v830
        %v832 = vsel %vm765, %v829, %v830
        %v833 = vmul.f32 %v831, 0.00048828125
        %v834 = vmul.f32 %v832, 0.00048828125
        %v835 = vmul.f32 %v827, %v827
        %v836 = vmul.f32 %v828, %v828
        %v837 = vsub.f32 %v833, %v835
        %v838 = vsub.f32 %v834, %v836
        %v839 = vmax.f32 %v837, 0.0
        %v840 = vmax.f32 %v838, 0.0
        %v841 = vadd.f32 %v839, 1e-05
        %v842 = vadd.f32 %v840, 1e-05
        %v843 = vrsqrt.pop %v841
        %v844 = vrsqrt.pop %v842
        %v845 = vld [vmem:[%s3] sm:$0xff]
        %v846 = vld [vmem:[%s3 + $0x8] sm:$0xff]
        %v847 = vmul.f32 %v843, %v845
        %v848 = vmul.f32 %v844, %v846
        %v849 = vld [vmem:[%s4] sm:$0xff]
        %v850 = vld [vmem:[%s4 + $0x8] sm:$0xff]
        %v851 = vmul.f32 %v827, %v847
        %v852 = vmul.f32 %v828, %v848
        %v853 = vsub.f32 %v849, %v851
        %v854 = vsub.f32 %v850, %v852
        %856 = vset.pattern.permute.xlu0 0
        %857 = vperm.xlu0 %856, %v847
        %v858 = vpop.permute.xlu0 %857
        %861 = vset.pattern.permute.xlu0 0
        %862 = vperm.xlu0 %861, %v848
        %v863 = vpop.permute.xlu0 %862
        %v865 = vmul.f32 %v662, %v858
        %v866 = vmul.f32 %v663, %v858
        %v867 = vmul.f32 %v664, %v858
        %v868 = vmul.f32 %v665, %v863
        %v869 = vmul.f32 %v666, %v863
        %v870 = vmul.f32 %v667, %v863
        %872 = vset.pattern.permute.xlu0 0
        %873 = vperm.xlu0 %872, %v853
        %v874 = vpop.permute.xlu0 %873
        %877 = vset.pattern.permute.xlu0 0
        %878 = vperm.xlu0 %877, %v854
        %v879 = vpop.permute.xlu0 %878
        %v881 = vadd.f32 %v865, %v874
        %v882 = vadd.f32 %v866, %v874
        %v883 = vadd.f32 %v867, %v874
        %v884 = vadd.f32 %v868, %v879
        %v885 = vadd.f32 %v869, %v879
        %v886 = vadd.f32 %v870, %v879
        %v887 = vsub.f32 0.0, %v881
        %v888 = vsub.f32 0.0, %v882
        %v889 = vsub.f32 0.0, %v883
        %v890 = vsub.f32 0.0, %v884
        %v891 = vsub.f32 0.0, %v885
        %v892 = vsub.f32 0.0, %v886
        %v893 = vmul.f32 %v887, 1.442695
        %v894 = vpow.pop %v893
        %v895 = vmul.f32 %v888, 1.442695
        %v896 = vpow.pop %v895
        %v897 = vmul.f32 %v889, 1.442695
        %v898 = vpow.pop %v897
        %v899 = vmul.f32 %v890, 1.442695
        %v900 = vpow.pop %v899
        %v901 = vmul.f32 %v891, 1.442695
        %v902 = vpow.pop %v901
        %v903 = vmul.f32 %v892, 1.442695
        %v904 = vpow.pop %v903
        %v905 = vadd.f32 %v894, 1.0
        %v906 = vadd.f32 %v896, 1.0
        %v907 = vadd.f32 %v898, 1.0
        %v908 = vadd.f32 %v900, 1.0
        %v909 = vadd.f32 %v902, 1.0
        %v910 = vadd.f32 %v904, 1.0
        %v911 = vrcp.pop %v905
        %v912 = vrcp.pop %v906
        %v913 = vrcp.pop %v907
        %v914 = vrcp.pop %v908
        %v915 = vrcp.pop %v909
        %v916 = vrcp.pop %v910
        %v917 = vmul.f32 %v881, %v911
        %v918 = vmul.f32 %v882, %v912
        %v919 = vmul.f32 %v883, %v913
        %v920 = vmul.f32 %v884, %v914
        %v921 = vmul.f32 %v885, %v915
        %v922 = vmul.f32 %v886, %v916
        %v923 = vpack.c.bf16 %v920, %v917
        %v924 = vpack.c.bf16 %v921, %v918
        %v925 = vpack.c.bf16 %v922, %v919
        %v929 = vunpack.c.l.b16 %v923
        %v930 = vunpack.c.l.b16 %v924
        %v931 = vunpack.c.l.b16 %v925
        %v932 = vunpack.c.h.b16 %v923
        %v933 = vunpack.c.h.b16 %v924
        %v934 = vunpack.c.h.b16 %v925
        %v935 = vpack.c.b16 %v930, %v929
        %v936 = vpack.c.b16 %v931, %v931
        %v937 = vpack.c.b16 %v933, %v932
        %v938 = vpack.c.b16 %v934, %v934
        %943 = vst [vmem:[%s217] sm:$0xff] %v935
        %vm944 = vcmask 257024
        %945 = vst.msk [vmem:[%s217 + $0x8] sm:$0xf] %vm944, %v936
        %946 = vst [vmem:[%s217 + $0xc] sm:$0xff] %v937
        %947 = vst.msk [vmem:[%s217 + $0x14] sm:$0xf] %vm944, %v938
        %s948 = sand.u32 %s137, 1
        %s949 = scalar_lea.sflag [#allocation5], %s948
        %s950 = sand.u32 %s137, 1
        %s951 = smul.addr %s950, 24
        %s952 = scalar_lea.vmem [#allocation4], %s951
        // Predicated region
        $region41: #{tpu_custom_call.1} parent=39 // pred_check
          %p953 = pneg %p147
        $region42: #{tpu_custom_call.1} parent=39 // pred_check_branch
          %955 = sbr.rel (%p953) target = $region44
        $region43: #{tpu_custom_call.1} parent=39 // pred_region
          %s957 = ssub.s32 384, 384
          %958 = vsyncadd %s949, %s957
          %s959 = smul.addr %s19, 6
          %s960 = smul.addr %s959, 64
          %s961 = scalar_lea.hbm %s5, %s960
          %s962 = sshll.u32 %s952, 4
          %s963 = int_to_ptr.vmem [resolvable:$true] %s962
          %968 = dma.vmem_to_hbm [thread:$0]  %s963, 384, %s961, %s949, 192, 192, 12
        $region44: #{tpu_custom_call.1} parent=39 // pred_fallthru
          _
      $region40: #{tpu_custom_call.1} parent=5 // pred_fallthru
        _
      %p969 = scmp.le.s32.totalorder 2, %s14
      // Predicated region
      $region45: #{tpu_custom_call.1} parent=5 // pred_check
        %p970 = pneg %p969
      $region46: #{tpu_custom_call.1} parent=5 // pred_check_branch
        %972 = sbr.rel (%p970) target = $region48
      $region47: #{tpu_custom_call.1} parent=5 // pred_region
        %s973 = ssub.s32 %s14, 2
        // Predicated region
        $region49: #{tpu_custom_call.1} parent=47 // pred_check
          %p974 = pneg %p153
        $region50: #{tpu_custom_call.1} parent=47 // pred_check_branch
          %976 = sbr.rel (%p974) target = $region52
        $region51: #{tpu_custom_call.1} parent=47 // pred_region
          %s977 = sand.u32 %s138, 1
          %s978 = scalar_lea.sflag [#allocation5], %s977
          %s979 = sand.u32 %s138, 1
          %s980 = smul.addr %s979, 24
          %s981 = scalar_lea.vmem [#allocation4], %s980
          %982 = dma.done %s978, 384
        $region52: #{tpu_custom_call.1} parent=47 // pred_fallthru
          _
      $region48: #{tpu_custom_call.1} parent=5 // pred_fallthru
        _
    $region6: #{tpu_custom_call.1} parent=1 // loop_footer
      %s18 = sadd.s32 1, %s14
    $region7: #{tpu_custom_call.1} parent=1 // loop_footer_branch
      %13 = sbr.rel target = $region3
    $region8: #{tpu_custom_call.1} parent=1 // loop_exit
      _
    %983 = vsyncpa [#allocation5], 1
    %s984 = scalar_lea.sflag [#allocation5], 1
    %985 = vsyncpa %s984, 1

</llo_original>
